<compile_context>
chip_gen: v5e
topology: v5e:2x2
jax: 0.10.0
libtpu: 0.0.40
codegen_flags: <defaults>
</compile_context>

<pallas_src>
import math

import jax
import jax.numpy as jnp
from jax.experimental import pallas as pl
from jax.experimental.pallas import tpu as pltpu

LOG_SQRT_2PI = 0.5 * math.log(2.0 * math.pi)


def vae_kernel(v_ref, eps_ref, we_ref, wmv_ref, b_ref, out_ref):
    h = eps_ref.shape[-1]
    input_dim = v_ref.shape[-1]

    v = v_ref[...]
    eps = eps_ref[...]

    # encoder:  x = v @ We + be
    x = jnp.dot(v, we_ref[...], preferred_element_type=jnp.float32) + b_ref[:, :h]

    # fused heads:  [mu | log_var] = x @ [Wmu|Wvar] + [bmu|bvar]
    mv = jnp.dot(x, wmv_ref[...], preferred_element_type=jnp.float32) + b_ref[:, h:]
    mu = mv[:, :h]
    log_var = mv[:, h:]

    std = jnp.exp(log_var * 0.5)
    z = mu + std * eps                                   # q.rsample()

    # kl = sum(log q(z) - log p(z)) simplified exactly to 0.5*sum(z^2 - eps^2 - lvar)
    kl = 0.5 * jnp.sum(z * z - eps * eps - log_var, axis=1, keepdims=True)

    # Normal(v_hat, 1).log_prob(v_hat).sum(1) is a constant (decoder is dead compute).
    log_ptz = -float(input_dim) * LOG_SQRT_2PI

    out_ref[...] = kl - log_ptz


def vae_forward(v_t, y_t, eps, params, *, block_b=256):
    """Returns L_t_y with shape [batch], matching the PyTorch forward.

    y_t and the decoder weights do not influence L_t_y (the reconstruction
    log-prob is evaluated at its own mean, a constant), so they are not
    shipped to the kernel at all.
    """
    We, be, Wmu, bmu, Wvar, bvar, Wd, bd = params
    del y_t, Wd, bd  # dead with respect to L_t_y

    B, input_dim = v_t.shape
    H = We.shape[1]

    # Parameter prep (in production, fuse once ahead of time, not per call).
    Wmv = jnp.concatenate([Wmu, Wvar], axis=1)        # [H, 2H]
    b_all = jnp.concatenate([be, bmu, bvar], axis=1)  # [1, 3H]  (be | bmu | bvar)

    # Batch tiling: weights stay resident across the grid; activation tiles are
    # double-buffered by BlockSpec.  block_b sized well below the 32 MiB scoped
    # VMEM budget (also safe for v7x's 64 MiB physical VMEM).
    tb = B if B <= block_b else block_b
    grid = (pl.cdiv(B, tb),)

    out = pl.pallas_call(
        vae_kernel,
        grid=grid,
        in_specs=[
            pl.BlockSpec((tb, input_dim), lambda i: (i, 0)),   # v_t tile
            pl.BlockSpec((tb, H), lambda i: (i, 0)),           # eps tile
            pl.BlockSpec((input_dim, H), lambda i: (0, 0)),    # We (resident)
            pl.BlockSpec((H, 2 * H), lambda i: (0, 0)),        # [Wmu|Wvar] (resident)
            pl.BlockSpec((1, 3 * H), lambda i: (0, 0)),        # packed biases (resident)
        ],
        out_specs=pl.BlockSpec((tb, 1), lambda i: (i, 0)),
        out_shape=jax.ShapeDtypeStruct((B, 1), jnp.float32),
        compiler_params=pltpu.CompilerParams(
            dimension_semantics=("parallel",),       # split batch across TCs (v7x)
            vmem_limit_bytes=32 * 1024 * 1024,
        ),
    )(v_t, eps, We, Wmv, b_all)
    return out[:, 0]


def _reference(v_t, y_t, eps, params):
    """Pure-JAX reference mirroring the PyTorch forward literally (decoder included)."""
    We, be, Wmu, bmu, Wvar, bvar, Wd, bd = params
    x = v_t @ We + be
    mu = x @ Wmu + bmu
    log_var = x @ Wvar + bvar
    std = jnp.exp(log_var / 2.0)
    z = mu + std * eps
    v_hat = jnp.concatenate([z, y_t], axis=1) @ Wd + bd
    log_ptz = jnp.sum(-0.5 * (v_hat - v_hat) ** 2 - LOG_SQRT_2PI, axis=1)
    log_qzx = -jnp.log(std) - LOG_SQRT_2PI - 0.5 * ((z - mu) / std) ** 2
    log_pz = -LOG_SQRT_2PI - 0.5 * z * z
    kl = jnp.sum(log_qzx - log_pz, axis=1)
    return kl - log_ptz


if __name__ == "__main__":
    # Small shapes consistent with the module: Linear layers over feature dims.
    B, INPUT_DIM, VAE_HIDDEN, K_NUM = 8, 16, 32, 8

    key = jax.random.PRNGKey(0)
    keys = jax.random.split(key, 12)

    def linear_init(kw, kb, fan_in, w_shape, b_shape):
        bound = 1.0 / math.sqrt(fan_in)
        w = jax.random.uniform(kw, w_shape, jnp.float32, -bound, bound)
        b = jax.random.uniform(kb, b_shape, jnp.float32, -bound, bound)
        return w, b

    # Weights stored as [in, out]; biases as [1, out] for broadcasting.
    We, be = linear_init(keys[0], keys[1], INPUT_DIM, (INPUT_DIM, VAE_HIDDEN), (1, VAE_HIDDEN))
    Wmu, bmu = linear_init(keys[2], keys[3], VAE_HIDDEN, (VAE_HIDDEN, VAE_HIDDEN), (1, VAE_HIDDEN))
    Wvar, bvar = linear_init(keys[4], keys[5], VAE_HIDDEN, (VAE_HIDDEN, VAE_HIDDEN), (1, VAE_HIDDEN))
    Wd, bd = linear_init(keys[6], keys[7], VAE_HIDDEN + K_NUM,
                         (VAE_HIDDEN + K_NUM, INPUT_DIM), (1, INPUT_DIM))
    params = (We, be, Wmu, bmu, Wvar, bvar, Wd, bd)

    v_t = jax.random.normal(keys[8], (B, INPUT_DIM), jnp.float32)
    y_t = jax.random.normal(keys[9], (B, K_NUM), jnp.float32)
    # TODO(synk): torch's q.rsample() draws eps inside the module; here the
    # standard-normal noise is passed in so the kernel can be checked against a
    # deterministic reference (in production, pltpu.prng_seed +
    # pltpu.stateful_normal could generate it in-kernel and drop this DMA).
    eps = jax.random.normal(keys[10], (B, VAE_HIDDEN), jnp.float32)

    out = vae_forward(v_t, y_t, eps, params)
    jax.block_until_ready(out)

    ref = _reference(v_t, y_t, eps, params)
    assert out.shape == (B,)
    assert jnp.allclose(out, ref, atol=1e-3, rtol=1e-4), (out, ref)

    print("KERNEL_OK")
</pallas_src>

<mosaic_0001>
module attributes {stable_mosaic.version = 11 : i64} {
  func.func @vae_kernel(%arg0: i32, %arg1: memref<8x16xf32, #tpu.memory_space<vmem>>, %arg2: memref<8x32xf32, #tpu.memory_space<vmem>>, %arg3: memref<16x32xf32, #tpu.memory_space<vmem>>, %arg4: memref<32x64xf32, #tpu.memory_space<vmem>>, %arg5: memref<1x96xf32, #tpu.memory_space<vmem>>, %arg6: memref<8x1xf32, #tpu.memory_space<vmem>>) attributes {dimension_semantics = [#tpu.dimension_semantics<parallel>], iteration_bounds = array<i64: 1>, scalar_prefetch = 0 : i64, scratch_operands = 0 : i64, tpu.core_type = #tpu.core_type<tc>, window_params = [{transform_indices = @transform_0, window_bounds = array<i64: 8, 16>}, {transform_indices = @transform_1, window_bounds = array<i64: 8, 32>}, {pipeline_mode = #tpu.pipeline_mode<synchronous>, transform_indices = @transform_2, window_bounds = array<i64: 16, 32>}, {pipeline_mode = #tpu.pipeline_mode<synchronous>, transform_indices = @transform_3, window_bounds = array<i64: 32, 64>}, {pipeline_mode = #tpu.pipeline_mode<synchronous>, transform_indices = @transform_4, window_bounds = array<i64: 1, 96>}, {transform_indices = @transform_5, window_bounds = array<i64: 8, 1>}]} {
    %c0 = arith.constant 0 : index
    %c0_0 = arith.constant 0 : index
    %0 = vector.load %arg1[%c0, %c0_0] : memref<8x16xf32, #tpu.memory_space<vmem>>, vector<8x16xf32>
    %c0_1 = arith.constant 0 : index
    %c0_2 = arith.constant 0 : index
    %1 = vector.load %arg2[%c0_1, %c0_2] : memref<8x32xf32, #tpu.memory_space<vmem>>, vector<8x32xf32>
    %c0_3 = arith.constant 0 : index
    %c0_4 = arith.constant 0 : index
    %2 = vector.load %arg3[%c0_3, %c0_4] : memref<16x32xf32, #tpu.memory_space<vmem>>, vector<16x32xf32>
    %cst = arith.constant dense<0.000000e+00> : vector<8x32xf32>
    %3 = tpu.matmul %0, %2, %cst {dimension_numbers = #tpu.dot_dimension_numbers<[1], [0], [0], [1], [0, 0, 1, 1], [], []>} : vector<8x16xf32>, vector<16x32xf32>, vector<8x32xf32> -> vector<8x32xf32>
    %c0_5 = arith.constant 0 : index
    %c0_6 = arith.constant 0 : index
    %4 = vector.load %arg5[%c0_5, %c0_6] : memref<1x96xf32, #tpu.memory_space<vmem>>, vector<1x32xf32>
    %5 = vector.broadcast %4 : vector<1x32xf32> to vector<8x32xf32>
    %6 = arith.addf %3, %5 : vector<8x32xf32>
    %c0_7 = arith.constant 0 : index
    %c0_8 = arith.constant 0 : index
    %7 = vector.load %arg4[%c0_7, %c0_8] : memref<32x64xf32, #tpu.memory_space<vmem>>, vector<32x64xf32>
    %cst_9 = arith.constant dense<0.000000e+00> : vector<8x64xf32>
    %8 = tpu.matmul %6, %7, %cst_9 {dimension_numbers = #tpu.dot_dimension_numbers<[1], [0], [0], [1], [0, 0, 1, 1], [], []>} : vector<8x32xf32>, vector<32x64xf32>, vector<8x64xf32> -> vector<8x64xf32>
    %c0_10 = arith.constant 0 : index
    %c32 = arith.constant 32 : index
    %9 = vector.load %arg5[%c0_10, %c32] : memref<1x96xf32, #tpu.memory_space<vmem>>, vector<1x64xf32>
    %10 = vector.broadcast %9 : vector<1x64xf32> to vector<8x64xf32>
    %11 = arith.addf %8, %10 : vector<8x64xf32>
    %12 = vector.extract_strided_slice %11 {offsets = [0, 0], sizes = [8, 32], strides = [1, 1]} : vector<8x64xf32> to vector<8x32xf32>
    %13 = vector.extract_strided_slice %11 {offsets = [0, 32], sizes = [8, 32], strides = [1, 1]} : vector<8x64xf32> to vector<8x32xf32>
    %cst_11 = arith.constant 5.000000e-01 : f32
    %14 = vector.broadcast %cst_11 : f32 to vector<8x32xf32>
    %15 = arith.mulf %13, %14 : vector<8x32xf32>
    %16 = math.exp %15 : vector<8x32xf32>
    %17 = arith.mulf %16, %1 : vector<8x32xf32>
    %18 = arith.addf %12, %17 : vector<8x32xf32>
    %19 = arith.mulf %18, %18 : vector<8x32xf32>
    %20 = arith.mulf %1, %1 : vector<8x32xf32>
    %21 = arith.subf %19, %20 : vector<8x32xf32>
    %22 = arith.subf %21, %13 : vector<8x32xf32>
    %cst_12 = arith.constant dense<0.000000e+00> : vector<8xf32>
    %23 = vector.multi_reduction <add>, %22, %cst_12 [1] : vector<8x32xf32> to vector<8xf32>
    %24 = vector.shape_cast %23 : vector<8xf32> to vector<8x1xf32>
    %cst_13 = arith.constant 5.000000e-01 : f32
    %25 = vector.broadcast %cst_13 : f32 to vector<8x1xf32>
    %26 = arith.mulf %25, %24 : vector<8x1xf32>
    %cst_14 = arith.constant -14.7030163 : f32
    %27 = vector.broadcast %cst_14 : f32 to vector<8x1xf32>
    %28 = arith.subf %26, %27 : vector<8x1xf32>
    %c0_15 = arith.constant 0 : index
    %c0_16 = arith.constant 0 : index
    %29 = vector.load %arg6[%c0_15, %c0_16] : memref<8x1xf32, #tpu.memory_space<vmem>>, vector<8x1xf32>
    tpu.vector_store %arg6[%c0_15, %c0_16], %28 {strides = array<i32>} : memref<8x1xf32, #tpu.memory_space<vmem>>, vector<8x1xf32>,
    return
  }
  func.func @transform_0(%arg0: i32) -> (i32, i32) {
    %c0_i32 = arith.constant 0 : i32
    %c0_i32_0 = arith.constant 0 : i32
    return %arg0, %c0_i32 : i32, i32
  }
  func.func @transform_1(%arg0: i32) -> (i32, i32) {
    %c0_i32 = arith.constant 0 : i32
    %c0_i32_0 = arith.constant 0 : i32
    return %arg0, %c0_i32 : i32, i32
  }
  func.func @transform_2(%arg0: i32) -> (i32, i32) {
    %c0_i32 = arith.constant 0 : i32
    %c0_i32_0 = arith.constant 0 : i32
    %c0_i32_1 = arith.constant 0 : i32
    return %c0_i32, %c0_i32_0 : i32, i32
  }
  func.func @transform_3(%arg0: i32) -> (i32, i32) {
    %c0_i32 = arith.constant 0 : i32
    %c0_i32_0 = arith.constant 0 : i32
    %c0_i32_1 = arith.constant 0 : i32
    return %c0_i32, %c0_i32_0 : i32, i32
  }
  func.func @transform_4(%arg0: i32) -> (i32, i32) {
    %c0_i32 = arith.constant 0 : i32
    %c0_i32_0 = arith.constant 0 : i32
    %c0_i32_1 = arith.constant 0 : i32
    return %c0_i32, %c0_i32_0 : i32, i32
  }
  func.func @transform_5(%arg0: i32) -> (i32, i32) {
    %c0_i32 = arith.constant 0 : i32
    %c0_i32_0 = arith.constant 0 : i32
    return %arg0, %c0_i32 : i32, i32
  }
}

</mosaic_0001>

<llo_original>
// kernel: tpu_custom_call.1
$region0: #{tpu_custom_call.1}
  #allocation0 [shape = 'u32[]', space=smem, size = 0x4, offset = 0x4, fixed_abs, tag = 'smem constant byte address 0x4 - core index']
  #allocation1 [shape = 'u32[72,128]{1,0:T(1,128)}', space=vmem, size = 0x9000, scoped, tag = 'internal scratch']
  %s0 = inlined_call_operand.hbm [shape: f32[8,16], index: 0, kind: input, shape index: {}]
  %s1 = inlined_call_operand.hbm [shape: f32[8,32], index: 1, kind: input, shape index: {}]
  %s2 = inlined_call_operand.hbm [shape: f32[16,32], index: 2, kind: input, shape index: {}]
  %s3 = inlined_call_operand.hbm [shape: f32[32,64], index: 3, kind: input, shape index: {}]
  %s4 = inlined_call_operand.vmem [shape: f32[1,96], index: 4, kind: input, shape index: {}]
  %s5 = inlined_call_operand.vmem [shape: f32[8,1], index: 5, kind: output, shape index: {}]
  %s6 = sld [smem:[#allocation0]]
  $region46: #{tpu_custom_call.1} parent=0
    _
  %s8 = ssub.s32 1, %s6
  %s9 = scalar_select 0, %s8, %s6
  $region1: #{tpu_custom_call.1} parent=0
    #allocation2 [shape = 'u8[4096]{0}', space=vmem, size = 0x1000, scoped, tag = 'input window, operand 0, single buffered']
    #allocation3 [shape = 's32[1]{0}', space=sflag, size = 0x4, scoped, tag = 'scoped memory for tpu_custom_call.1']
    #allocation4 [shape = 'u8[4096]{0}', space=vmem, size = 0x1000, scoped, tag = 'input window, operand 1, single buffered']
    #allocation5 [shape = 's32[1]{0}', space=sflag, size = 0x4, scoped, tag = 'scoped memory for tpu_custom_call.1']
    #allocation6 [shape = 'u8[8192]{0}', space=vmem, size = 0x2000, scoped, tag = 'input window, operand 2, single buffered']
    #allocation7 [shape = 'u8[16384]{0}', space=vmem, size = 0x4000, scoped, tag = 'input window, operand 3, single buffered']
    #allocation8 [shape = 's32[1]{0}', space=sflag, size = 0x4, scoped, tag = 'scoped memory for tpu_custom_call.1']
    %10 = vsyncpa [#allocation3], 0
    %11 = vsyncpa [#allocation5], 0
    %12 = vsyncpa [#allocation8], 0
    // Predicated region
    $region2: #{tpu_custom_call.1} parent=1 // pred_check
      _
    $region3: #{tpu_custom_call.1} parent=1 // pred_check_branch
      %14 = sbr.rel (0) target = $region5
    $region4: #{tpu_custom_call.1} parent=1 // pred_region
      %16 = vsyncadd [#allocation3], 0
      %s18 = sshll.u32 %s0, 4
      %s19 = int_to_ptr.hbm [resolvable:$true] %s18
      %s20 = sshll.u32 [#allocation2], 4
      %s21 = int_to_ptr.vmem [resolvable:$true] %s20
      %23 = dma.hbm_to_vmem [thread:$0]  %s19, 128, %s21, [#allocation3]
    $region5: #{tpu_custom_call.1} parent=1 // pred_fallthru
      _
    // Predicated region
    $region6: #{tpu_custom_call.1} parent=1 // pred_check
      _
    $region7: #{tpu_custom_call.1} parent=1 // pred_check_branch
      %25 = sbr.rel (0) target = $region9
    $region8: #{tpu_custom_call.1} parent=1 // pred_region
      %27 = vsyncadd [#allocation5], 0
      %s29 = sshll.u32 %s1, 4
      %s30 = int_to_ptr.hbm [resolvable:$true] %s29
      %s31 = sshll.u32 [#allocation4], 4
      %s32 = int_to_ptr.vmem [resolvable:$true] %s31
      %34 = dma.hbm_to_vmem [thread:$0]  %s30, 128, %s32, [#allocation5]
    $region9: #{tpu_custom_call.1} parent=1 // pred_fallthru
      _
    // Predicated region
    $region10: #{tpu_custom_call.1} parent=1 // pred_check
      _
    $region11: #{tpu_custom_call.1} parent=1 // pred_check_branch
      %36 = sbr.rel (0) target = $region13
    $region12: #{tpu_custom_call.1} parent=1 // pred_region
      %38 = vsyncadd [#allocation5], 0
      %s39 = sshll.u32 %s2, 4
      %s40 = int_to_ptr.hbm [resolvable:$true] %s39
      %s41 = sshll.u32 [#allocation6], 4
      %s42 = int_to_ptr.vmem [resolvable:$true] %s41
      %47 = dma.hbm_to_vmem [thread:$0]  %s40, 256, %s42, [#allocation5], 128, 128, 8
    $region13: #{tpu_custom_call.1} parent=1 // pred_fallthru
      _
    // Predicated region
    $region14: #{tpu_custom_call.1} parent=1 // pred_check
      _
    $region15: #{tpu_custom_call.1} parent=1 // pred_check_branch
      %49 = sbr.rel (0) target = $region17
    $region16: #{tpu_custom_call.1} parent=1 // pred_region
      %51 = vsyncadd [#allocation8], 0
      %s52 = sshll.u32 %s3, 4
      %s53 = int_to_ptr.hbm [resolvable:$true] %s52
      %s54 = sshll.u32 [#allocation7], 4
      %s55 = int_to_ptr.vmem [resolvable:$true] %s54
      %60 = dma.hbm_to_vmem [thread:$0]  %s53, 512, %s55, [#allocation8], 128, 128, 8
    $region17: #{tpu_custom_call.1} parent=1 // pred_fallthru
      _
    // Predicated region
    $region18: #{tpu_custom_call.1} parent=1 // pred_check
      _
    $region19: #{tpu_custom_call.1} parent=1 // pred_check_branch
      %62 = sbr.rel (0) target = $region21
    $region20: #{tpu_custom_call.1} parent=1 // pred_region
      _
    $region21: #{tpu_custom_call.1} parent=1 // pred_fallthru
      _
    // Predicated region
    $region22: #{tpu_custom_call.1} parent=1 // pred_check
      _
    $region23: #{tpu_custom_call.1} parent=1 // pred_check_branch
      %64 = sbr.rel (0) target = $region25
    $region24: #{tpu_custom_call.1} parent=1 // pred_region
      %66 = dma.done [#allocation3], 128
    $region25: #{tpu_custom_call.1} parent=1 // pred_fallthru
      _
    // Predicated region
    $region26: #{tpu_custom_call.1} parent=1 // pred_check
      _
    $region27: #{tpu_custom_call.1} parent=1 // pred_check_branch
      %68 = sbr.rel (0) target = $region29
    $region28: #{tpu_custom_call.1} parent=1 // pred_region
      %70 = dma.done [#allocation5], 128
    $region29: #{tpu_custom_call.1} parent=1 // pred_fallthru
      _
    // Predicated region
    $region30: #{tpu_custom_call.1} parent=1 // pred_check
      _
    $region31: #{tpu_custom_call.1} parent=1 // pred_check_branch
      %72 = sbr.rel (0) target = $region33
    $region32: #{tpu_custom_call.1} parent=1 // pred_region
      %74 = dma.done [#allocation5], 256
    $region33: #{tpu_custom_call.1} parent=1 // pred_fallthru
      _
    // Predicated region
    $region34: #{tpu_custom_call.1} parent=1 // pred_check
      _
    $region35: #{tpu_custom_call.1} parent=1 // pred_check_branch
      %76 = sbr.rel (0) target = $region37
    $region36: #{tpu_custom_call.1} parent=1 // pred_region
      %78 = dma.done [#allocation8], 512
    $region37: #{tpu_custom_call.1} parent=1 // pred_fallthru
      _
    %v79 = vld [vmem:[#allocation2] sm:$0xff]
    %v80 = vld [vmem:[#allocation4] sm:$0xff]
    %v81 = vld [vmem:[#allocation6] sm:$0xff]
    %v82 = vld [vmem:[#allocation6 + $0x8] sm:$0xff]
    %v83 = vld [vmem:[%s4] sm:$0x1]
    %v85 = vperm.slane %v83, 0
    %vm87 = vcmask 130048
    %v89 = vsel %vm87, %v79, 0
    %91 = vmatpush.msra.mxu0 0.0
    %92 = vmatpush.msra.mxu0 0.0
    %93 = vmatpush.msra.mxu0 0.0
    %94 = vmatpush.msra.mxu0 0.0
    %95 = vmatpush.msra.mxu0 0.0
    %96 = vmatpush.msra.mxu0 0.0
    %97 = vmatpush.msra.mxu0 0.0
    %98 = vmatpush.msra.mxu0 0.0
    %99 = vmatpush.msra.mxu0 0.0
    %100 = vmatpush.msra.mxu0 0.0
    %101 = vmatpush.msra.mxu0 0.0
    %102 = vmatpush.msra.mxu0 0.0
    %103 = vmatpush.msra.mxu0 0.0
    %104 = vmatpush.msra.mxu0 0.0
    %105 = vmatpush.msra.mxu0 %v82
    %106 = vmatpush.msra.mxu0 %v81
    %107 = vmatmul.f32.gmra.mxu0 %v89
    %v108 = vpop.f32.mrf.mxu0
    %v109 = vadd.f32 %v85, %v108
    %110 = vdwg.mxu0
    %v111 = vld [vmem:[#allocation7] sm:$0xff]
    %v112 = vld [vmem:[#allocation7 + $0x8] sm:$0xff]
    %v113 = vld [vmem:[#allocation7 + $0x10] sm:$0xff]
    %v114 = vld [vmem:[#allocation7 + $0x18] sm:$0xff]
    %115 = vrot.lane.b32.xlu0 %v85, 96
    %v116 = vpop.permute.xlu0 %115
    %vm118 = vcmask 261120
    %v120 = vsel %vm118, %v109, 0
    %122 = vmatpush.msra.mxu0 0.0
    %123 = vmatpush.msra.mxu0 0.0
    %124 = vmatpush.msra.mxu0 0.0
    %125 = vmatpush.msra.mxu0 0.0
    %126 = vmatpush.msra.mxu0 0.0
    %127 = vmatpush.msra.mxu0 0.0
    %128 = vmatpush.msra.mxu0 0.0
    %129 = vmatpush.msra.mxu0 0.0
    %130 = vmatpush.msra.mxu0 0.0
    %131 = vmatpush.msra.mxu0 0.0
    %132 = vmatpush.msra.mxu0 0.0
    %133 = vmatpush.msra.mxu0 0.0
    %134 = vmatpush.msra.mxu0 %v114
    %135 = vmatpush.msra.mxu0 %v113
    %136 = vmatpush.msra.mxu0 %v112
    %137 = vmatpush.msra.mxu0 %v111
    %138 = vmatmul.f32.gmra.mxu0 %v120
    %v139 = vpop.f32.mrf.mxu0
    %v140 = vadd.f32 %v116, %v139
    %141 = vdwg.mxu0
    %v142 = vmul.f32 %v140, 0.5
    %v143 = vmul.f32 %v142, 1.442695
    %v144 = vpow.pop %v143
    %146 = vrot.lane.b32.xlu0 %v80, 32
    %v147 = vpop.permute.xlu0 %146
    %v149 = vmul.f32 %v144, %v147
    %151 = vrot.lane.b32.xlu0 %v149, 96
    %v152 = vpop.permute.xlu0 %151
    %v154 = vadd.f32 %v140, %v152
    %v155 = vmul.f32 %v154, %v154
    %v156 = vmul.f32 %v80, %v80
    %v157 = vsub.f32 %v155, %v156
    %159 = vrot.lane.b32.xlu0 %v140, 96
    %v160 = vpop.permute.xlu0 %159
    %v162 = vsub.f32 %v157, %v160
    %v163 = vsel %vm118, %v162, 0.0
    %164 = vadd.xlane.f32.xlu0 %v163
    %v165 = vpop.xlane.xlu0 %164
    %v166 = vmul.f32 %v165, 0.5
    %v167 = vsub.f32 %v166, -14.703016
    %vm168 = vcmask 7168
    %169 = vst.msk [vmem:[%s5] sm:$0xff] %vm168, %v167
    // Predicated region
    $region38: #{tpu_custom_call.1} parent=1 // pred_check
      _
    $region39: #{tpu_custom_call.1} parent=1 // pred_check_branch
      %171 = sbr.rel (0) target = $region41
    $region40: #{tpu_custom_call.1} parent=1 // pred_region
      _
    $region41: #{tpu_custom_call.1} parent=1 // pred_fallthru
      _
    // Predicated region
    $region42: #{tpu_custom_call.1} parent=1 // pred_check
      _
    $region43: #{tpu_custom_call.1} parent=1 // pred_check_branch
      %173 = sbr.rel (0) target = $region45
    $region44: #{tpu_custom_call.1} parent=1 // pred_region
      _
    $region45: #{tpu_custom_call.1} parent=1 // pred_fallthru
      _
    %174 = vsyncpa [#allocation3], 1
    %175 = vsyncpa [#allocation5], 1
    %176 = vsyncpa [#allocation8], 1

</llo_original>
